<compile_context>
chip_gen: v7x
topology: tpu7x:2x2x1
jax: 0.10.0
libtpu: 0.0.40
codegen_flags: <defaults>
</compile_context>

<pallas_src>
import jax
import jax.numpy as jnp
from jax.experimental import pallas as pl
from jax.experimental.pallas import tpu as pltpu


def _lstm_kernel(x_ref, wih_ref, whh_ref, b_ref, wfc_ref, bfc_ref, out_ref):
    H = whh_ref.shape[0]
    G = 4 * H
    if x_ref.ndim == 2:
        B, T = x_ref.shape
    else:
        B, T, _ = x_ref.shape

    whh = whh_ref[...]            # (H, 4H) — loaded once, stays in vregs
    bias = b_ref[...]             # (1, 4H) fused (b_ih + b_hh)

    # ---- hoisted input projection (independent of h -> off the serial chain) ----
    if x_ref.ndim == 2:
        # D_in == 1 fast path: rank-1 "matmul" is just a broadcast multiply (VPU).
        x_bt = x_ref[...]                                   # (B, T)
        wih_b = jnp.broadcast_to(wih_ref[...], (B, G))      # hoisted broadcasts
        bias_b = jnp.broadcast_to(bias, (B, G))
        xp = [x_bt[:, t:t + 1] * wih_b + bias_b for t in range(T)]
    else:
        # General D_in: one MXU call for all timesteps.
        xg = jax.lax.dot_general(
            x_ref[...], wih_ref[...],
            dimension_numbers=(((2,), (0,)), ((), ())),
            preferred_element_type=jnp.float32) + bias      # (B, T, 4H)
        xp = [xg[:, t, :] for t in range(T)]

    # ---- serial LSTM recurrence; h/c live in vregs, loop fully unrolled ----
    h = jnp.zeros((B, H), jnp.float32)
    c = jnp.zeros((B, H), jnp.float32)
    for t in range(T):
        gates = xp[t] + jnp.dot(h, whh, preferred_element_type=jnp.float32)
        sg = jax.nn.sigmoid(gates)        # one EUP pass over the whole (B,4H) vreg
        tg = jnp.tanh(gates)              # one EUP pass over the whole (B,4H) vreg
        i_g = sg[:, 0 * H:1 * H]
        f_g = sg[:, 1 * H:2 * H]
        g_g = tg[:, 2 * H:3 * H]
        o_g = sg[:, 3 * H:4 * H]
        c = f_g * c + i_g * g_g
        h = o_g * jnp.tanh(c)

    # ---- final Linear on last hidden state ----
    wfc = wfc_ref[...]                    # (future, H), PyTorch layout
    if wfc.shape[0] == 1:
        # future == 1: VPU multiply + lane reduction beats an N=1 MXU matmul.
        out = jnp.sum(h * wfc, axis=-1, keepdims=True) + bfc_ref[...]
    else:
        out = jnp.dot(h, wfc.T, preferred_element_type=jnp.float32) + bfc_ref[...]
    out_ref[...] = out.astype(out_ref.dtype)


@jax.jit
def simple_lstm_forward(x, w_ih, w_hh, b_ih, b_hh, w_fc, b_fc):
    """x: (B, T, D_in) float32. Returns (B, future_steps) float32."""
    B, T, D_in = x.shape
    H4 = w_ih.shape[0]
    H = H4 // 4
    future = w_fc.shape[0]

    # Drop the size-1 feature axis for the D_in == 1 fast path (cheap squeeze,
    # not a transpose); keep batch-first layout otherwise.
    x_in = x[:, :, 0] if D_in == 1 else x
    wih_t = w_ih.T                          # (D_in, 4H)
    whh_t = w_hh.T                          # (H, 4H)
    b = (b_ih + b_hh).reshape(1, H4)        # (1, 4H)
    bfc = b_fc.reshape(1, future)           # (1, future)

    return pl.pallas_call(
        _lstm_kernel,
        out_shape=jax.ShapeDtypeStruct((B, future), jnp.float32),
        in_specs=[pl.BlockSpec(memory_space=pltpu.MemorySpace.VMEM)] * 6,
        out_specs=pl.BlockSpec(memory_space=pltpu.MemorySpace.VMEM),
    )(x_in, wih_t, whh_t, b, w_fc, bfc)


def _reference_forward(x, w_ih, w_hh, b_ih, b_hh, w_fc, b_fc):
    """Pure-JAX reference matching torch.nn.LSTM + Linear semantics."""
    B, T, _ = x.shape
    H = w_hh.shape[1]
    h = jnp.zeros((B, H), jnp.float32)
    c = jnp.zeros((B, H), jnp.float32)
    for t in range(T):
        g = x[:, t, :] @ w_ih.T + b_ih + h @ w_hh.T + b_hh
        i = jax.nn.sigmoid(g[:, 0 * H:1 * H])
        f = jax.nn.sigmoid(g[:, 1 * H:2 * H])
        gg = jnp.tanh(g[:, 2 * H:3 * H])
        o = jax.nn.sigmoid(g[:, 3 * H:4 * H])
        c = f * c + i * gg
        h = o * jnp.tanh(c)
    return h @ w_fc.T + b_fc


if __name__ == "__main__":
    # Module config (matches baselines_hurdat_trim.py globals):
    input_dim = 1
    lstm_output_dim = 32   # hidden size H
    future_steps = 1
    B, T = 8, 8

    key = jax.random.PRNGKey(0)
    ks = jax.random.split(key, 8)
    H = lstm_output_dim
    bound = 1.0 / jnp.sqrt(jnp.float32(H))

    # PyTorch-shaped parameters, deterministic uniform(-1/sqrt(H), 1/sqrt(H)).
    w_ih = jax.random.uniform(ks[0], (4 * H, input_dim), jnp.float32, -bound, bound)
    w_hh = jax.random.uniform(ks[1], (4 * H, H), jnp.float32, -bound, bound)
    b_ih = jax.random.uniform(ks[2], (4 * H,), jnp.float32, -bound, bound)
    b_hh = jax.random.uniform(ks[3], (4 * H,), jnp.float32, -bound, bound)
    w_fc = jax.random.uniform(ks[4], (future_steps, H), jnp.float32, -bound, bound)
    b_fc = jax.random.uniform(ks[5], (future_steps,), jnp.float32, -bound, bound)

    x = jax.random.normal(ks[6], (B, T, input_dim), jnp.float32)

    out = simple_lstm_forward(x, w_ih, w_hh, b_ih, b_hh, w_fc, b_fc)
    out = jax.block_until_ready(out)

    ref = _reference_forward(x, w_ih, w_hh, b_ih, b_hh, w_fc, b_fc)
    assert out.shape == (B, future_steps)
    assert jnp.allclose(out, ref, atol=1e-5, rtol=1e-5), (out, ref)

    print("KERNEL_OK")
</pallas_src>

<mosaic_0001>
module attributes {stable_mosaic.version = 11 : i64} {
  func.func @_lstm_kernel(%arg0: memref<8x8xf32, #tpu.memory_space<vmem>>, %arg1: memref<1x128xf32, #tpu.memory_space<vmem>>, %arg2: memref<32x128xf32, #tpu.memory_space<vmem>>, %arg3: memref<1x128xf32, #tpu.memory_space<vmem>>, %arg4: memref<1x32xf32, #tpu.memory_space<vmem>>, %arg5: memref<1x1xf32, #tpu.memory_space<vmem>>, %arg6: memref<8x1xf32, #tpu.memory_space<vmem>>) attributes {dimension_semantics = [], scalar_prefetch = 0 : i64, scratch_operands = 0 : i64, tpu.core_type = #tpu.core_type<tc>} {
    %c0 = arith.constant 0 : index
    %c0_0 = arith.constant 0 : index
    %0 = vector.load %arg2[%c0, %c0_0] : memref<32x128xf32, #tpu.memory_space<vmem>>, vector<32x128xf32>
    %c0_1 = arith.constant 0 : index
    %c0_2 = arith.constant 0 : index
    %1 = vector.load %arg3[%c0_1, %c0_2] : memref<1x128xf32, #tpu.memory_space<vmem>>, vector<1x128xf32>
    %c0_3 = arith.constant 0 : index
    %c0_4 = arith.constant 0 : index
    %2 = vector.load %arg0[%c0_3, %c0_4] : memref<8x8xf32, #tpu.memory_space<vmem>>, vector<8x8xf32>
    %c0_5 = arith.constant 0 : index
    %c0_6 = arith.constant 0 : index
    %3 = vector.load %arg1[%c0_5, %c0_6] : memref<1x128xf32, #tpu.memory_space<vmem>>, vector<1x128xf32>
    %4 = vector.shape_cast %3 : vector<1x128xf32> to vector<1x128xf32>
    %5 = vector.broadcast %4 : vector<1x128xf32> to vector<8x128xf32>
    %6 = vector.shape_cast %1 : vector<1x128xf32> to vector<1x128xf32>
    %7 = vector.broadcast %6 : vector<1x128xf32> to vector<8x128xf32>
    %8 = vector.extract_strided_slice %2 {offsets = [0, 0], sizes = [8, 1], strides = [1, 1]} : vector<8x8xf32> to vector<8x1xf32>
    %9 = vector.broadcast %8 : vector<8x1xf32> to vector<8x128xf32>
    %10 = arith.mulf %9, %5 : vector<8x128xf32>
    %11 = arith.addf %10, %7 : vector<8x128xf32>
    %12 = vector.extract_strided_slice %2 {offsets = [0, 1], sizes = [8, 1], strides = [1, 1]} : vector<8x8xf32> to vector<8x1xf32>
    %13 = vector.broadcast %12 : vector<8x1xf32> to vector<8x128xf32>
    %14 = arith.mulf %13, %5 : vector<8x128xf32>
    %15 = arith.addf %14, %7 : vector<8x128xf32>
    %16 = vector.extract_strided_slice %2 {offsets = [0, 2], sizes = [8, 1], strides = [1, 1]} : vector<8x8xf32> to vector<8x1xf32>
    %17 = vector.broadcast %16 : vector<8x1xf32> to vector<8x128xf32>
    %18 = arith.mulf %17, %5 : vector<8x128xf32>
    %19 = arith.addf %18, %7 : vector<8x128xf32>
    %20 = vector.extract_strided_slice %2 {offsets = [0, 3], sizes = [8, 1], strides = [1, 1]} : vector<8x8xf32> to vector<8x1xf32>
    %21 = vector.broadcast %20 : vector<8x1xf32> to vector<8x128xf32>
    %22 = arith.mulf %21, %5 : vector<8x128xf32>
    %23 = arith.addf %22, %7 : vector<8x128xf32>
    %24 = vector.extract_strided_slice %2 {offsets = [0, 4], sizes = [8, 1], strides = [1, 1]} : vector<8x8xf32> to vector<8x1xf32>
    %25 = vector.broadcast %24 : vector<8x1xf32> to vector<8x128xf32>
    %26 = arith.mulf %25, %5 : vector<8x128xf32>
    %27 = arith.addf %26, %7 : vector<8x128xf32>
    %28 = vector.extract_strided_slice %2 {offsets = [0, 5], sizes = [8, 1], strides = [1, 1]} : vector<8x8xf32> to vector<8x1xf32>
    %29 = vector.broadcast %28 : vector<8x1xf32> to vector<8x128xf32>
    %30 = arith.mulf %29, %5 : vector<8x128xf32>
    %31 = arith.addf %30, %7 : vector<8x128xf32>
    %32 = vector.extract_strided_slice %2 {offsets = [0, 6], sizes = [8, 1], strides = [1, 1]} : vector<8x8xf32> to vector<8x1xf32>
    %33 = vector.broadcast %32 : vector<8x1xf32> to vector<8x128xf32>
    %34 = arith.mulf %33, %5 : vector<8x128xf32>
    %35 = arith.addf %34, %7 : vector<8x128xf32>
    %36 = vector.extract_strided_slice %2 {offsets = [0, 7], sizes = [8, 1], strides = [1, 1]} : vector<8x8xf32> to vector<8x1xf32>
    %37 = vector.broadcast %36 : vector<8x1xf32> to vector<8x128xf32>
    %38 = arith.mulf %37, %5 : vector<8x128xf32>
    %39 = arith.addf %38, %7 : vector<8x128xf32>
    %cst = arith.constant 0.000000e+00 : f32
    %40 = vector.broadcast %cst : f32 to vector<8x32xf32>
    %cst_7 = arith.constant 0.000000e+00 : f32
    %41 = vector.broadcast %cst_7 : f32 to vector<8x32xf32>
    %cst_8 = arith.constant dense<0.000000e+00> : vector<8x128xf32>
    %42 = tpu.matmul %40, %0, %cst_8 {dimension_numbers = #tpu.dot_dimension_numbers<[1], [0], [0], [1], [0, 0, 1, 1], [], []>} : vector<8x32xf32>, vector<32x128xf32>, vector<8x128xf32> -> vector<8x128xf32>
    %43 = arith.addf %11, %42 : vector<8x128xf32>
    %44 = arith.negf %43 : vector<8x128xf32>
    %45 = math.exp %44 : vector<8x128xf32>
    %cst_9 = arith.constant 1.000000e+00 : f32
    %46 = vector.broadcast %cst_9 : f32 to vector<8x128xf32>
    %47 = arith.addf %46, %45 : vector<8x128xf32>
    %48 = arith.divf %46, %47 : vector<8x128xf32>
    %49 = math.tanh %43 : vector<8x128xf32>
    %50 = vector.extract_strided_slice %48 {offsets = [0, 0], sizes = [8, 32], strides = [1, 1]} : vector<8x128xf32> to vector<8x32xf32>
    %51 = vector.extract_strided_slice %48 {offsets = [0, 32], sizes = [8, 32], strides = [1, 1]} : vector<8x128xf32> to vector<8x32xf32>
    %52 = vector.extract_strided_slice %49 {offsets = [0, 64], sizes = [8, 32], strides = [1, 1]} : vector<8x128xf32> to vector<8x32xf32>
    %53 = vector.extract_strided_slice %48 {offsets = [0, 96], sizes = [8, 32], strides = [1, 1]} : vector<8x128xf32> to vector<8x32xf32>
    %54 = arith.mulf %51, %41 : vector<8x32xf32>
    %55 = arith.mulf %50, %52 : vector<8x32xf32>
    %56 = arith.addf %54, %55 : vector<8x32xf32>
    %57 = math.tanh %56 : vector<8x32xf32>
    %58 = arith.mulf %53, %57 : vector<8x32xf32>
    %cst_10 = arith.constant dense<0.000000e+00> : vector<8x128xf32>
    %59 = tpu.matmul %58, %0, %cst_10 {dimension_numbers = #tpu.dot_dimension_numbers<[1], [0], [0], [1], [0, 0, 1, 1], [], []>} : vector<8x32xf32>, vector<32x128xf32>, vector<8x128xf32> -> vector<8x128xf32>
    %60 = arith.addf %15, %59 : vector<8x128xf32>
    %61 = arith.negf %60 : vector<8x128xf32>
    %62 = math.exp %61 : vector<8x128xf32>
    %cst_11 = arith.constant 1.000000e+00 : f32
    %63 = vector.broadcast %cst_11 : f32 to vector<8x128xf32>
    %64 = arith.addf %63, %62 : vector<8x128xf32>
    %65 = arith.divf %63, %64 : vector<8x128xf32>
    %66 = math.tanh %60 : vector<8x128xf32>
    %67 = vector.extract_strided_slice %65 {offsets = [0, 0], sizes = [8, 32], strides = [1, 1]} : vector<8x128xf32> to vector<8x32xf32>
    %68 = vector.extract_strided_slice %65 {offsets = [0, 32], sizes = [8, 32], strides = [1, 1]} : vector<8x128xf32> to vector<8x32xf32>
    %69 = vector.extract_strided_slice %66 {offsets = [0, 64], sizes = [8, 32], strides = [1, 1]} : vector<8x128xf32> to vector<8x32xf32>
    %70 = vector.extract_strided_slice %65 {offsets = [0, 96], sizes = [8, 32], strides = [1, 1]} : vector<8x128xf32> to vector<8x32xf32>
    %71 = arith.mulf %68, %56 : vector<8x32xf32>
    %72 = arith.mulf %67, %69 : vector<8x32xf32>
    %73 = arith.addf %71, %72 : vector<8x32xf32>
    %74 = math.tanh %73 : vector<8x32xf32>
    %75 = arith.mulf %70, %74 : vector<8x32xf32>
    %cst_12 = arith.constant dense<0.000000e+00> : vector<8x128xf32>
    %76 = tpu.matmul %75, %0, %cst_12 {dimension_numbers = #tpu.dot_dimension_numbers<[1], [0], [0], [1], [0, 0, 1, 1], [], []>} : vector<8x32xf32>, vector<32x128xf32>, vector<8x128xf32> -> vector<8x128xf32>
    %77 = arith.addf %19, %76 : vector<8x128xf32>
    %78 = arith.negf %77 : vector<8x128xf32>
    %79 = math.exp %78 : vector<8x128xf32>
    %cst_13 = arith.constant 1.000000e+00 : f32
    %80 = vector.broadcast %cst_13 : f32 to vector<8x128xf32>
    %81 = arith.addf %80, %79 : vector<8x128xf32>
    %82 = arith.divf %80, %81 : vector<8x128xf32>
    %83 = math.tanh %77 : vector<8x128xf32>
    %84 = vector.extract_strided_slice %82 {offsets = [0, 0], sizes = [8, 32], strides = [1, 1]} : vector<8x128xf32> to vector<8x32xf32>
    %85 = vector.extract_strided_slice %82 {offsets = [0, 32], sizes = [8, 32], strides = [1, 1]} : vector<8x128xf32> to vector<8x32xf32>
    %86 = vector.extract_strided_slice %83 {offsets = [0, 64], sizes = [8, 32], strides = [1, 1]} : vector<8x128xf32> to vector<8x32xf32>
    %87 = vector.extract_strided_slice %82 {offsets = [0, 96], sizes = [8, 32], strides = [1, 1]} : vector<8x128xf32> to vector<8x32xf32>
    %88 = arith.mulf %85, %73 : vector<8x32xf32>
    %89 = arith.mulf %84, %86 : vector<8x32xf32>
    %90 = arith.addf %88, %89 : vector<8x32xf32>
    %91 = math.tanh %90 : vector<8x32xf32>
    %92 = arith.mulf %87, %91 : vector<8x32xf32>
    %cst_14 = arith.constant dense<0.000000e+00> : vector<8x128xf32>
    %93 = tpu.matmul %92, %0, %cst_14 {dimension_numbers = #tpu.dot_dimension_numbers<[1], [0], [0], [1], [0, 0, 1, 1], [], []>} : vector<8x32xf32>, vector<32x128xf32>, vector<8x128xf32> -> vector<8x128xf32>
    %94 = arith.addf %23, %93 : vector<8x128xf32>
    %95 = arith.negf %94 : vector<8x128xf32>
    %96 = math.exp %95 : vector<8x128xf32>
    %cst_15 = arith.constant 1.000000e+00 : f32
    %97 = vector.broadcast %cst_15 : f32 to vector<8x128xf32>
    %98 = arith.addf %97, %96 : vector<8x128xf32>
    %99 = arith.divf %97, %98 : vector<8x128xf32>
    %100 = math.tanh %94 : vector<8x128xf32>
    %101 = vector.extract_strided_slice %99 {offsets = [0, 0], sizes = [8, 32], strides = [1, 1]} : vector<8x128xf32> to vector<8x32xf32>
    %102 = vector.extract_strided_slice %99 {offsets = [0, 32], sizes = [8, 32], strides = [1, 1]} : vector<8x128xf32> to vector<8x32xf32>
    %103 = vector.extract_strided_slice %100 {offsets = [0, 64], sizes = [8, 32], strides = [1, 1]} : vector<8x128xf32> to vector<8x32xf32>
    %104 = vector.extract_strided_slice %99 {offsets = [0, 96], sizes = [8, 32], strides = [1, 1]} : vector<8x128xf32> to vector<8x32xf32>
    %105 = arith.mulf %102, %90 : vector<8x32xf32>
    %106 = arith.mulf %101, %103 : vector<8x32xf32>
    %107 = arith.addf %105, %106 : vector<8x32xf32>
    %108 = math.tanh %107 : vector<8x32xf32>
    %109 = arith.mulf %104, %108 : vector<8x32xf32>
    %cst_16 = arith.constant dense<0.000000e+00> : vector<8x128xf32>
    %110 = tpu.matmul %109, %0, %cst_16 {dimension_numbers = #tpu.dot_dimension_numbers<[1], [0], [0], [1], [0, 0, 1, 1], [], []>} : vector<8x32xf32>, vector<32x128xf32>, vector<8x128xf32> -> vector<8x128xf32>
    %111 = arith.addf %27, %110 : vector<8x128xf32>
    %112 = arith.negf %111 : vector<8x128xf32>
    %113 = math.exp %112 : vector<8x128xf32>
    %cst_17 = arith.constant 1.000000e+00 : f32
    %114 = vector.broadcast %cst_17 : f32 to vector<8x128xf32>
    %115 = arith.addf %114, %113 : vector<8x128xf32>
    %116 = arith.divf %114, %115 : vector<8x128xf32>
    %117 = math.tanh %111 : vector<8x128xf32>
    %118 = vector.extract_strided_slice %116 {offsets = [0, 0], sizes = [8, 32], strides = [1, 1]} : vector<8x128xf32> to vector<8x32xf32>
    %119 = vector.extract_strided_slice %116 {offsets = [0, 32], sizes = [8, 32], strides = [1, 1]} : vector<8x128xf32> to vector<8x32xf32>
    %120 = vector.extract_strided_slice %117 {offsets = [0, 64], sizes = [8, 32], strides = [1, 1]} : vector<8x128xf32> to vector<8x32xf32>
    %121 = vector.extract_strided_slice %116 {offsets = [0, 96], sizes = [8, 32], strides = [1, 1]} : vector<8x128xf32> to vector<8x32xf32>
    %122 = arith.mulf %119, %107 : vector<8x32xf32>
    %123 = arith.mulf %118, %120 : vector<8x32xf32>
    %124 = arith.addf %122, %123 : vector<8x32xf32>
    %125 = math.tanh %124 : vector<8x32xf32>
    %126 = arith.mulf %121, %125 : vector<8x32xf32>
    %cst_18 = arith.constant dense<0.000000e+00> : vector<8x128xf32>
    %127 = tpu.matmul %126, %0, %cst_18 {dimension_numbers = #tpu.dot_dimension_numbers<[1], [0], [0], [1], [0, 0, 1, 1], [], []>} : vector<8x32xf32>, vector<32x128xf32>, vector<8x128xf32> -> vector<8x128xf32>
    %128 = arith.addf %31, %127 : vector<8x128xf32>
    %129 = arith.negf %128 : vector<8x128xf32>
    %130 = math.exp %129 : vector<8x128xf32>
    %cst_19 = arith.constant 1.000000e+00 : f32
    %131 = vector.broadcast %cst_19 : f32 to vector<8x128xf32>
    %132 = arith.addf %131, %130 : vector<8x128xf32>
    %133 = arith.divf %131, %132 : vector<8x128xf32>
    %134 = math.tanh %128 : vector<8x128xf32>
    %135 = vector.extract_strided_slice %133 {offsets = [0, 0], sizes = [8, 32], strides = [1, 1]} : vector<8x128xf32> to vector<8x32xf32>
    %136 = vector.extract_strided_slice %133 {offsets = [0, 32], sizes = [8, 32], strides = [1, 1]} : vector<8x128xf32> to vector<8x32xf32>
    %137 = vector.extract_strided_slice %134 {offsets = [0, 64], sizes = [8, 32], strides = [1, 1]} : vector<8x128xf32> to vector<8x32xf32>
    %138 = vector.extract_strided_slice %133 {offsets = [0, 96], sizes = [8, 32], strides = [1, 1]} : vector<8x128xf32> to vector<8x32xf32>
    %139 = arith.mulf %136, %124 : vector<8x32xf32>
    %140 = arith.mulf %135, %137 : vector<8x32xf32>
    %141 = arith.addf %139, %140 : vector<8x32xf32>
    %142 = math.tanh %141 : vector<8x32xf32>
    %143 = arith.mulf %138, %142 : vector<8x32xf32>
    %cst_20 = arith.constant dense<0.000000e+00> : vector<8x128xf32>
    %144 = tpu.matmul %143, %0, %cst_20 {dimension_numbers = #tpu.dot_dimension_numbers<[1], [0], [0], [1], [0, 0, 1, 1], [], []>} : vector<8x32xf32>, vector<32x128xf32>, vector<8x128xf32> -> vector<8x128xf32>
    %145 = arith.addf %35, %144 : vector<8x128xf32>
    %146 = arith.negf %145 : vector<8x128xf32>
    %147 = math.exp %146 : vector<8x128xf32>
    %cst_21 = arith.constant 1.000000e+00 : f32
    %148 = vector.broadcast %cst_21 : f32 to vector<8x128xf32>
    %149 = arith.addf %148, %147 : vector<8x128xf32>
    %150 = arith.divf %148, %149 : vector<8x128xf32>
    %151 = math.tanh %145 : vector<8x128xf32>
    %152 = vector.extract_strided_slice %150 {offsets = [0, 0], sizes = [8, 32], strides = [1, 1]} : vector<8x128xf32> to vector<8x32xf32>
    %153 = vector.extract_strided_slice %150 {offsets = [0, 32], sizes = [8, 32], strides = [1, 1]} : vector<8x128xf32> to vector<8x32xf32>
    %154 = vector.extract_strided_slice %151 {offsets = [0, 64], sizes = [8, 32], strides = [1, 1]} : vector<8x128xf32> to vector<8x32xf32>
    %155 = vector.extract_strided_slice %150 {offsets = [0, 96], sizes = [8, 32], strides = [1, 1]} : vector<8x128xf32> to vector<8x32xf32>
    %156 = arith.mulf %153, %141 : vector<8x32xf32>
    %157 = arith.mulf %152, %154 : vector<8x32xf32>
    %158 = arith.addf %156, %157 : vector<8x32xf32>
    %159 = math.tanh %158 : vector<8x32xf32>
    %160 = arith.mulf %155, %159 : vector<8x32xf32>
    %cst_22 = arith.constant dense<0.000000e+00> : vector<8x128xf32>
    %161 = tpu.matmul %160, %0, %cst_22 {dimension_numbers = #tpu.dot_dimension_numbers<[1], [0], [0], [1], [0, 0, 1, 1], [], []>} : vector<8x32xf32>, vector<32x128xf32>, vector<8x128xf32> -> vector<8x128xf32>
    %162 = arith.addf %39, %161 : vector<8x128xf32>
    %163 = arith.negf %162 : vector<8x128xf32>
    %164 = math.exp %163 : vector<8x128xf32>
    %cst_23 = arith.constant 1.000000e+00 : f32
    %165 = vector.broadcast %cst_23 : f32 to vector<8x128xf32>
    %166 = arith.addf %165, %164 : vector<8x128xf32>
    %167 = arith.divf %165, %166 : vector<8x128xf32>
    %168 = math.tanh %162 : vector<8x128xf32>
    %169 = vector.extract_strided_slice %167 {offsets = [0, 0], sizes = [8, 32], strides = [1, 1]} : vector<8x128xf32> to vector<8x32xf32>
    %170 = vector.extract_strided_slice %167 {offsets = [0, 32], sizes = [8, 32], strides = [1, 1]} : vector<8x128xf32> to vector<8x32xf32>
    %171 = vector.extract_strided_slice %168 {offsets = [0, 64], sizes = [8, 32], strides = [1, 1]} : vector<8x128xf32> to vector<8x32xf32>
    %172 = vector.extract_strided_slice %167 {offsets = [0, 96], sizes = [8, 32], strides = [1, 1]} : vector<8x128xf32> to vector<8x32xf32>
    %173 = arith.mulf %170, %158 : vector<8x32xf32>
    %174 = arith.mulf %169, %171 : vector<8x32xf32>
    %175 = arith.addf %173, %174 : vector<8x32xf32>
    %176 = math.tanh %175 : vector<8x32xf32>
    %177 = arith.mulf %172, %176 : vector<8x32xf32>
    %c0_24 = arith.constant 0 : index
    %c0_25 = arith.constant 0 : index
    %178 = vector.load %arg4[%c0_24, %c0_25] : memref<1x32xf32, #tpu.memory_space<vmem>>, vector<1x32xf32>
    %179 = vector.broadcast %178 : vector<1x32xf32> to vector<8x32xf32>
    %180 = arith.mulf %177, %179 : vector<8x32xf32>
    %cst_26 = arith.constant dense<0.000000e+00> : vector<8xf32>
    %181 = vector.multi_reduction <add>, %180, %cst_26 [1] : vector<8x32xf32> to vector<8xf32>
    %182 = vector.shape_cast %181 : vector<8xf32> to vector<8x1xf32>
    %c0_27 = arith.constant 0 : index
    %c0_28 = arith.constant 0 : index
    %183 = vector.load %arg5[%c0_27, %c0_28] : memref<1x1xf32, #tpu.memory_space<vmem>>, vector<1x1xf32>
    %184 = vector.broadcast %183 : vector<1x1xf32> to vector<8x1xf32>
    %185 = arith.addf %182, %184 : vector<8x1xf32>
    %c0_29 = arith.constant 0 : index
    %c0_30 = arith.constant 0 : index
    %186 = vector.load %arg6[%c0_29, %c0_30] : memref<8x1xf32, #tpu.memory_space<vmem>>, vector<8x1xf32>
    tpu.vector_store %arg6[%c0_29, %c0_30], %185 {strides = array<i32>} : memref<8x1xf32, #tpu.memory_space<vmem>>, vector<8x1xf32>,
    return
  }
}

</mosaic_0001>

<llo_original>
// kernel: simple_lstm_forward.1
$region0: #{simple_lstm_forward.1}
  #allocation0 [shape = 'u32[]', space=smem, size = 0x4, offset = 0x4, fixed_abs, tag = 'smem constant byte address 0x4 - core index']
  #allocation1 [shape = 'u32[144,128]{1,0:T(1,128)}', space=vmem, size = 0x12000, scoped, tag = 'internal scratch']
  #allocation2 [shape = 'f32[1,1]{1,0:T(1,128)S(1)}', space=vmem, size = 0x200, scoped, tag = 'scoped memory for simple_lstm_forward.1']
  %s0 = inlined_call_operand.vmem [shape: f32[8,8], index: 0, kind: input, shape index: {}]
  %s1 = inlined_call_operand.vmem [shape: f32[1,128], index: 1, kind: input, shape index: {}]
  %s2 = inlined_call_operand.hbm [shape: f32[32,128], index: 2, kind: input, shape index: {}]
  %s3 = inlined_call_operand.vmem [shape: f32[1,128], index: 3, kind: input, shape index: {}]
  %s4 = inlined_call_operand.vmem [shape: f32[1,32], index: 4, kind: input, shape index: {}]
  %s5 = inlined_call_operand.<no memory space> [shape: f32[1,1], index: 5, kind: input, shape index: {}]
  %s6 = inlined_call_operand.vmem [shape: f32[8,1], index: 6, kind: output, shape index: {}]
  %s7 = sld [smem:[#allocation0]]
  $region38: #{simple_lstm_forward.1} parent=0
    _
  %s9 = ssub.s32 1, %s7
  %s10 = scalar_select 0, %s9, %s7
  %v11 = vstv %s5
  %12 = vst [vmem:[#allocation2] sm:$0x1] %v11
  $region1: #{simple_lstm_forward.1} parent=0
    #allocation3 [shape = 'u8[16384]{0}', space=vmem, size = 0x4000, scoped, tag = 'input window, operand 2, single buffered']
    #allocation4 [shape = 's32[1]{0}', space=sflag, size = 0x4, scoped, tag = 'scoped memory for simple_lstm_forward.1']
    %13 = vsyncpa [#allocation4], 0
    // Predicated region
    $region2: #{simple_lstm_forward.1} parent=1 // pred_check
      _
    $region3: #{simple_lstm_forward.1} parent=1 // pred_check_branch
      %15 = sbr.rel (0) target = $region5
    $region4: #{simple_lstm_forward.1} parent=1 // pred_region
      _
    $region5: #{simple_lstm_forward.1} parent=1 // pred_fallthru
      _
    // Predicated region
    $region6: #{simple_lstm_forward.1} parent=1 // pred_check
      _
    $region7: #{simple_lstm_forward.1} parent=1 // pred_check_branch
      %17 = sbr.rel (0) target = $region9
    $region8: #{simple_lstm_forward.1} parent=1 // pred_region
      _
    $region9: #{simple_lstm_forward.1} parent=1 // pred_fallthru
      _
    // Predicated region
    $region10: #{simple_lstm_forward.1} parent=1 // pred_check
      _
    $region11: #{simple_lstm_forward.1} parent=1 // pred_check_branch
      %19 = sbr.rel (0) target = $region13
    $region12: #{simple_lstm_forward.1} parent=1 // pred_region
      %s21 = ssub.s32 512, 512
      %22 = vsyncadd [#allocation4], %s21
      %s23 = sshll.u32 [#allocation3], 4
      %s24 = int_to_ptr.vmem [resolvable:$true] %s23
      %29 = dma.hbm_to_vmem [thread:$0]  %s2, 512, %s24, [#allocation4], 128, 128, 8
    $region13: #{simple_lstm_forward.1} parent=1 // pred_fallthru
      _
    // Predicated region
    $region14: #{simple_lstm_forward.1} parent=1 // pred_check
      _
    $region15: #{simple_lstm_forward.1} parent=1 // pred_check_branch
      %31 = sbr.rel (0) target = $region17
    $region16: #{simple_lstm_forward.1} parent=1 // pred_region
      _
    $region17: #{simple_lstm_forward.1} parent=1 // pred_fallthru
      _
    // Predicated region
    $region18: #{simple_lstm_forward.1} parent=1 // pred_check
      _
    $region19: #{simple_lstm_forward.1} parent=1 // pred_check_branch
      %33 = sbr.rel (0) target = $region21
    $region20: #{simple_lstm_forward.1} parent=1 // pred_region
      _
    $region21: #{simple_lstm_forward.1} parent=1 // pred_fallthru
      _
    // Predicated region
    $region22: #{simple_lstm_forward.1} parent=1 // pred_check
      _
    $region23: #{simple_lstm_forward.1} parent=1 // pred_check_branch
      %35 = sbr.rel (0) target = $region25
    $region24: #{simple_lstm_forward.1} parent=1 // pred_region
      _
    $region25: #{simple_lstm_forward.1} parent=1 // pred_fallthru
      _
    // Predicated region
    $region26: #{simple_lstm_forward.1} parent=1 // pred_check
      _
    $region27: #{simple_lstm_forward.1} parent=1 // pred_check_branch
      %37 = sbr.rel (0) target = $region29
    $region28: #{simple_lstm_forward.1} parent=1 // pred_region
      %38 = dma.done [#allocation4], 512
    $region29: #{simple_lstm_forward.1} parent=1 // pred_fallthru
      _
    %v39 = vld [vmem:[#allocation3] sm:$0xff]
    %v40 = vld [vmem:[#allocation3 + $0x8] sm:$0xff]
    %v41 = vld [vmem:[#allocation3 + $0x10] sm:$0xff]
    %v42 = vld [vmem:[#allocation3 + $0x18] sm:$0xff]
    %v43 = vld [vmem:[%s3] sm:$0x1]
    %v44 = vld [vmem:[%s0] sm:$0xff]
    %v45 = vld [vmem:[%s1] sm:$0x1]
    %v47 = vlaneseq
    %v48 = vshrl.u32 %v47, 7
    %v49 = vsub.s32 0, %v48
    %v50 = vrot.slane %v45, %v49
    %v53 = vlaneseq
    %v54 = vshrl.u32 %v53, 7
    %v55 = vsub.s32 0, %v54
    %v56 = vrot.slane %v43, %v55
    %59 = vset.pattern.permute.xlu0 0
    %60 = vperm.xlu0 %59, %v44
    %v61 = vpop.permute.xlu0 %60
    %v63 = vmul.f32 %v61, %v50
    %v64 = vadd.f32 %v63, %v56
    %65 = vset.pattern.permute.xlu0 1
    %66 = vperm.xlu0 %65, %v44
    %v67 = vpop.permute.xlu0 %66
    %v69 = vmul.f32 %v67, %v50
    %v70 = vadd.f32 %v69, %v56
    %71 = vset.pattern.permute.xlu0 2
    %72 = vperm.xlu0 %71, %v44
    %v73 = vpop.permute.xlu0 %72
    %v75 = vmul.f32 %v73, %v50
    %v76 = vadd.f32 %v75, %v56
    %77 = vset.pattern.permute.xlu0 3
    %78 = vperm.xlu0 %77, %v44
    %v79 = vpop.permute.xlu0 %78
    %v81 = vmul.f32 %v79, %v50
    %v82 = vadd.f32 %v81, %v56
    %83 = vset.pattern.permute.xlu0 4
    %84 = vperm.xlu0 %83, %v44
    %v85 = vpop.permute.xlu0 %84
    %v87 = vmul.f32 %v85, %v50
    %v88 = vadd.f32 %v87, %v56
    %89 = vset.pattern.permute.xlu0 5
    %90 = vperm.xlu0 %89, %v44
    %v91 = vpop.permute.xlu0 %90
    %v93 = vmul.f32 %v91, %v50
    %v94 = vadd.f32 %v93, %v56
    %95 = vset.pattern.permute.xlu0 6
    %96 = vperm.xlu0 %95, %v44
    %v97 = vpop.permute.xlu0 %96
    %v99 = vmul.f32 %v97, %v50
    %v100 = vadd.f32 %v99, %v56
    %101 = vset.pattern.permute.xlu0 7
    %102 = vperm.xlu0 %101, %v44
    %v103 = vpop.permute.xlu0 %102
    %v105 = vmul.f32 %v103, %v50
    %v106 = vadd.f32 %v105, %v56
    %vm107 = vcmask 261120
    %v109 = vsel %vm107, 0.0, 0
    %111 = vmatprep.subr.mxu0 0.0
    %112 = vmatpush1.msra.mxu0 %v39
    %113 = vmatprep.subr.mxu0 0.0
    %114 = vmatpush1.msra.mxu0 %v40
    %115 = vmatprep.subr.mxu0 0.0
    %116 = vmatpush1.msra.mxu0 %v41
    %117 = vmatprep.subr.mxu0 0.0
    %118 = vmatpush1.msra.mxu0 %v42
    %119 = vmatprep.subr.mxu0 0.0
    %120 = vmatpush1.msra.mxu0 0.0
    %121 = vmatprep.subr.mxu0 0.0
    %122 = vmatpush1.msra.mxu0 0.0
    %123 = vmatprep.subr.mxu0 0.0
    %124 = vmatpush1.msra.mxu0 0.0
    %125 = vmatprep.subr.mxu0 0.0
    %126 = vmatpush1.msra.mxu0 0.0
    %127 = vmatprep.subr.mxu0 0.0
    %128 = vmatpush1.msra.mxu0 0.0
    %129 = vmatprep.subr.mxu0 0.0
    %130 = vmatpush1.msra.mxu0 0.0
    %131 = vmatprep.subr.mxu0 0.0
    %132 = vmatpush1.msra.mxu0 0.0
    %133 = vmatprep.subr.mxu0 0.0
    %134 = vmatpush1.msra.mxu0 0.0
    %135 = vmatprep.subr.mxu0 0.0
    %136 = vmatpush1.msra.mxu0 0.0
    %137 = vmatprep.subr.mxu0 0.0
    %138 = vmatpush1.msra.mxu0 0.0
    %139 = vmatprep.subr.mxu0 0.0
    %140 = vmatpush1.msra.mxu0 0.0
    %141 = vmatprep.subr.mxu0 0.0
    %142 = vmatpush1.msra.mxu0 0.0
    %143 = vmatprep.subr.mxu0 0.0
    %144 = vmatpush1.msra.mxu0 0.0
    %145 = vmatprep.subr.mxu0 0.0
    %146 = vmatpush1.msra.mxu0 0.0
    %147 = vmatprep.subr.mxu0 0.0
    %148 = vmatpush1.msra.mxu0 0.0
    %149 = vmatprep.subr.mxu0 0.0
    %150 = vmatpush1.msra.mxu0 0.0
    %151 = vmatprep.subr.mxu0 0.0
    %152 = vmatpush1.msra.mxu0 0.0
    %153 = vmatprep.subr.mxu0 0.0
    %154 = vmatpush1.msra.mxu0 0.0
    %155 = vmatprep.subr.mxu0 0.0
    %156 = vmatpush1.msra.mxu0 0.0
    %157 = vmatprep.subr.mxu0 0.0
    %158 = vmatpush1.msra.mxu0 0.0
    %159 = vmatprep.subr.mxu0 0.0
    %160 = vmatpush1.msra.mxu0 0.0
    %161 = vmatprep.subr.mxu0 0.0
    %162 = vmatpush1.msra.mxu0 0.0
    %163 = vmatprep.subr.mxu0 0.0
    %164 = vmatpush1.msra.mxu0 0.0
    %165 = vmatprep.subr.mxu0 0.0
    %166 = vmatpush1.msra.mxu0 0.0
    %167 = vmatprep.subr.mxu0 0.0
    %168 = vmatpush1.msra.mxu0 0.0
    %169 = vmatprep.subr.mxu0 0.0
    %170 = vmatpush1.msra.mxu0 0.0
    %171 = vmatprep.subr.mxu0 0.0
    %172 = vmatpush1.msra.mxu0 0.0
    %173 = vmatprep.subr.mxu0 0.0
    %174 = vmatpush1.msra.mxu0 0.0
    %175 = vmatprep.mubr.f32.mxu0 0.0
    %176 = vmatmul.mubr.f32.gmra.mrb[0].mxu0 %v109
    %v177 = vpop.f32.mrb[0].mxu0
    %v178 = vadd.f32 0.0, %v177
    %v179 = vpop.f32.mrb[0].mxu0
    %180 = vdwg.mxu0
    %v181 = vadd.f32 %v64, %v178
    %v182 = vxor.u32 %v181, 2147483648
    %v183 = vmul.f32 %v182, 1.442695
    %v184 = vpow.pop %v183
    %v185 = vadd.f32 %v184, 1.0
    %v186 = vrcp.pop %v185
    %v187 = vmul.f32 1.0, %v186
    %v188 = vtanh.pop %v181
    %v189 = vmul.f32 %v187, 0.0
    %191 = vrot.lane.b32.xlu0 %v188, 64
    %v192 = vpop.permute.xlu0 %191
    %v194 = vmul.f32 %v187, %v192
    %196 = vrot.lane.b32.xlu0 %v194, 32
    %v197 = vpop.permute.xlu0 %196
    %v199 = vadd.f32 %v189, %v197
    %v200 = vtanh.pop %v199
    %202 = vrot.lane.b32.xlu0 %v200, 64
    %v203 = vpop.permute.xlu0 %202
    %v205 = vmul.f32 %v187, %v203
    %207 = vrot.lane.b32.xlu0 %v205, 32
    %v208 = vpop.permute.xlu0 %207
    %v209 = vsel %vm107, %v208, 0
    %211 = vmatprep.subr.mxu0 0.0
    %212 = vmatpush1.msra.mxu0 %v39
    %213 = vmatprep.subr.mxu0 0.0
    %214 = vmatpush1.msra.mxu0 %v40
    %215 = vmatprep.subr.mxu0 0.0
    %216 = vmatpush1.msra.mxu0 %v41
    %217 = vmatprep.subr.mxu0 0.0
    %218 = vmatpush1.msra.mxu0 %v42
    %219 = vmatprep.subr.mxu0 0.0
    %220 = vmatpush1.msra.mxu0 0.0
    %221 = vmatprep.subr.mxu0 0.0
    %222 = vmatpush1.msra.mxu0 0.0
    %223 = vmatprep.subr.mxu0 0.0
    %224 = vmatpush1.msra.mxu0 0.0
    %225 = vmatprep.subr.mxu0 0.0
    %226 = vmatpush1.msra.mxu0 0.0
    %227 = vmatprep.subr.mxu0 0.0
    %228 = vmatpush1.msra.mxu0 0.0
    %229 = vmatprep.subr.mxu0 0.0
    %230 = vmatpush1.msra.mxu0 0.0
    %231 = vmatprep.subr.mxu0 0.0
    %232 = vmatpush1.msra.mxu0 0.0
    %233 = vmatprep.subr.mxu0 0.0
    %234 = vmatpush1.msra.mxu0 0.0
    %235 = vmatprep.subr.mxu0 0.0
    %236 = vmatpush1.msra.mxu0 0.0
    %237 = vmatprep.subr.mxu0 0.0
    %238 = vmatpush1.msra.mxu0 0.0
    %239 = vmatprep.subr.mxu0 0.0
    %240 = vmatpush1.msra.mxu0 0.0
    %241 = vmatprep.subr.mxu0 0.0
    %242 = vmatpush1.msra.mxu0 0.0
    %243 = vmatprep.subr.mxu0 0.0
    %244 = vmatpush1.msra.mxu0 0.0
    %245 = vmatprep.subr.mxu0 0.0
    %246 = vmatpush1.msra.mxu0 0.0
    %247 = vmatprep.subr.mxu0 0.0
    %248 = vmatpush1.msra.mxu0 0.0
    %249 = vmatprep.subr.mxu0 0.0
    %250 = vmatpush1.msra.mxu0 0.0
    %251 = vmatprep.subr.mxu0 0.0
    %252 = vmatpush1.msra.mxu0 0.0
    %253 = vmatprep.subr.mxu0 0.0
    %254 = vmatpush1.msra.mxu0 0.0
    %255 = vmatprep.subr.mxu0 0.0
    %256 = vmatpush1.msra.mxu0 0.0
    %257 = vmatprep.subr.mxu0 0.0
    %258 = vmatpush1.msra.mxu0 0.0
    %259 = vmatprep.subr.mxu0 0.0
    %260 = vmatpush1.msra.mxu0 0.0
    %261 = vmatprep.subr.mxu0 0.0
    %262 = vmatpush1.msra.mxu0 0.0
    %263 = vmatprep.subr.mxu0 0.0
    %264 = vmatpush1.msra.mxu0 0.0
    %265 = vmatprep.subr.mxu0 0.0
    %266 = vmatpush1.msra.mxu0 0.0
    %267 = vmatprep.subr.mxu0 0.0
    %268 = vmatpush1.msra.mxu0 0.0
    %269 = vmatprep.subr.mxu0 0.0
    %270 = vmatpush1.msra.mxu0 0.0
    %271 = vmatprep.subr.mxu0 0.0
    %272 = vmatpush1.msra.mxu0 0.0
    %273 = vmatprep.subr.mxu0 0.0
    %274 = vmatpush1.msra.mxu0 0.0
    %275 = vmatprep.mubr.f32.mxu0 0.0
    %276 = vmatmul.mubr.f32.gmra.mrb[0].mxu0 %v209
    %v277 = vpop.f32.mrb[0].mxu0
    %v278 = vadd.f32 0.0, %v277
    %v279 = vpop.f32.mrb[0].mxu0
    %280 = vdwg.mxu0
    %v281 = vadd.f32 %v70, %v278
    %v282 = vxor.u32 %v281, 2147483648
    %v283 = vmul.f32 %v282, 1.442695
    %v284 = vpow.pop %v283
    %v285 = vadd.f32 %v284, 1.0
    %v286 = vrcp.pop %v285
    %v287 = vmul.f32 1.0, %v286
    %v288 = vtanh.pop %v281
    %v289 = vmul.f32 %v287, %v199
    %291 = vrot.lane.b32.xlu0 %v288, 64
    %v292 = vpop.permute.xlu0 %291
    %v294 = vmul.f32 %v287, %v292
    %296 = vrot.lane.b32.xlu0 %v294, 32
    %v297 = vpop.permute.xlu0 %296
    %v299 = vadd.f32 %v289, %v297
    %v300 = vtanh.pop %v299
    %302 = vrot.lane.b32.xlu0 %v300, 64
    %v303 = vpop.permute.xlu0 %302
    %v305 = vmul.f32 %v287, %v303
    %307 = vrot.lane.b32.xlu0 %v305, 32
    %v308 = vpop.permute.xlu0 %307
    %v309 = vsel %vm107, %v308, 0
    %311 = vmatprep.subr.mxu0 0.0
    %312 = vmatpush1.msra.mxu0 %v39
    %313 = vmatprep.subr.mxu0 0.0
    %314 = vmatpush1.msra.mxu0 %v40
    %315 = vmatprep.subr.mxu0 0.0
    %316 = vmatpush1.msra.mxu0 %v41
    %317 = vmatprep.subr.mxu0 0.0
    %318 = vmatpush1.msra.mxu0 %v42
    %319 = vmatprep.subr.mxu0 0.0
    %320 = vmatpush1.msra.mxu0 0.0
    %321 = vmatprep.subr.mxu0 0.0
    %322 = vmatpush1.msra.mxu0 0.0
    %323 = vmatprep.subr.mxu0 0.0
    %324 = vmatpush1.msra.mxu0 0.0
    %325 = vmatprep.subr.mxu0 0.0
    %326 = vmatpush1.msra.mxu0 0.0
    %327 = vmatprep.subr.mxu0 0.0
    %328 = vmatpush1.msra.mxu0 0.0
    %329 = vmatprep.subr.mxu0 0.0
    %330 = vmatpush1.msra.mxu0 0.0
    %331 = vmatprep.subr.mxu0 0.0
    %332 = vmatpush1.msra.mxu0 0.0
    %333 = vmatprep.subr.mxu0 0.0
    %334 = vmatpush1.msra.mxu0 0.0
    %335 = vmatprep.subr.mxu0 0.0
    %336 = vmatpush1.msra.mxu0 0.0
    %337 = vmatprep.subr.mxu0 0.0
    %338 = vmatpush1.msra.mxu0 0.0
    %339 = vmatprep.subr.mxu0 0.0
    %340 = vmatpush1.msra.mxu0 0.0
    %341 = vmatprep.subr.mxu0 0.0
    %342 = vmatpush1.msra.mxu0 0.0
    %343 = vmatprep.subr.mxu0 0.0
    %344 = vmatpush1.msra.mxu0 0.0
    %345 = vmatprep.subr.mxu0 0.0
    %346 = vmatpush1.msra.mxu0 0.0
    %347 = vmatprep.subr.mxu0 0.0
    %348 = vmatpush1.msra.mxu0 0.0
    %349 = vmatprep.subr.mxu0 0.0
    %350 = vmatpush1.msra.mxu0 0.0
    %351 = vmatprep.subr.mxu0 0.0
    %352 = vmatpush1.msra.mxu0 0.0
    %353 = vmatprep.subr.mxu0 0.0
    %354 = vmatpush1.msra.mxu0 0.0
    %355 = vmatprep.subr.mxu0 0.0
    %356 = vmatpush1.msra.mxu0 0.0
    %357 = vmatprep.subr.mxu0 0.0
    %358 = vmatpush1.msra.mxu0 0.0
    %359 = vmatprep.subr.mxu0 0.0
    %360 = vmatpush1.msra.mxu0 0.0
    %361 = vmatprep.subr.mxu0 0.0
    %362 = vmatpush1.msra.mxu0 0.0
    %363 = vmatprep.subr.mxu0 0.0
    %364 = vmatpush1.msra.mxu0 0.0
    %365 = vmatprep.subr.mxu0 0.0
    %366 = vmatpush1.msra.mxu0 0.0
    %367 = vmatprep.subr.mxu0 0.0
    %368 = vmatpush1.msra.mxu0 0.0
    %369 = vmatprep.subr.mxu0 0.0
    %370 = vmatpush1.msra.mxu0 0.0
    %371 = vmatprep.subr.mxu0 0.0
    %372 = vmatpush1.msra.mxu0 0.0
    %373 = vmatprep.subr.mxu0 0.0
    %374 = vmatpush1.msra.mxu0 0.0
    %375 = vmatprep.mubr.f32.mxu0 0.0
    %376 = vmatmul.mubr.f32.gmra.mrb[0].mxu0 %v309
    %v377 = vpop.f32.mrb[0].mxu0
    %v378 = vadd.f32 0.0, %v377
    %v379 = vpop.f32.mrb[0].mxu0
    %380 = vdwg.mxu0
    %v381 = vadd.f32 %v76, %v378
    %v382 = vxor.u32 %v381, 2147483648
    %v383 = vmul.f32 %v382, 1.442695
    %v384 = vpow.pop %v383
    %v385 = vadd.f32 %v384, 1.0
    %v386 = vrcp.pop %v385
    %v387 = vmul.f32 1.0, %v386
    %v388 = vtanh.pop %v381
    %v389 = vmul.f32 %v387, %v299
    %391 = vrot.lane.b32.xlu0 %v388, 64
    %v392 = vpop.permute.xlu0 %391
    %v394 = vmul.f32 %v387, %v392
    %396 = vrot.lane.b32.xlu0 %v394, 32
    %v397 = vpop.permute.xlu0 %396
    %v399 = vadd.f32 %v389, %v397
    %v400 = vtanh.pop %v399
    %402 = vrot.lane.b32.xlu0 %v400, 64
    %v403 = vpop.permute.xlu0 %402
    %v405 = vmul.f32 %v387, %v403
    %407 = vrot.lane.b32.xlu0 %v405, 32
    %v408 = vpop.permute.xlu0 %407
    %v409 = vsel %vm107, %v408, 0
    %411 = vmatprep.subr.mxu0 0.0
    %412 = vmatpush1.msra.mxu0 %v39
    %413 = vmatprep.subr.mxu0 0.0
    %414 = vmatpush1.msra.mxu0 %v40
    %415 = vmatprep.subr.mxu0 0.0
    %416 = vmatpush1.msra.mxu0 %v41
    %417 = vmatprep.subr.mxu0 0.0
    %418 = vmatpush1.msra.mxu0 %v42
    %419 = vmatprep.subr.mxu0 0.0
    %420 = vmatpush1.msra.mxu0 0.0
    %421 = vmatprep.subr.mxu0 0.0
    %422 = vmatpush1.msra.mxu0 0.0
    %423 = vmatprep.subr.mxu0 0.0
    %424 = vmatpush1.msra.mxu0 0.0
    %425 = vmatprep.subr.mxu0 0.0
    %426 = vmatpush1.msra.mxu0 0.0
    %427 = vmatprep.subr.mxu0 0.0
    %428 = vmatpush1.msra.mxu0 0.0
    %429 = vmatprep.subr.mxu0 0.0
    %430 = vmatpush1.msra.mxu0 0.0
    %431 = vmatprep.subr.mxu0 0.0
    %432 = vmatpush1.msra.mxu0 0.0
    %433 = vmatprep.subr.mxu0 0.0
    %434 = vmatpush1.msra.mxu0 0.0
    %435 = vmatprep.subr.mxu0 0.0
    %436 = vmatpush1.msra.mxu0 0.0
    %437 = vmatprep.subr.mxu0 0.0
    %438 = vmatpush1.msra.mxu0 0.0
    %439 = vmatprep.subr.mxu0 0.0
    %440 = vmatpush1.msra.mxu0 0.0
    %441 = vmatprep.subr.mxu0 0.0
    %442 = vmatpush1.msra.mxu0 0.0
    %443 = vmatprep.subr.mxu0 0.0
    %444 = vmatpush1.msra.mxu0 0.0
    %445 = vmatprep.subr.mxu0 0.0
    %446 = vmatpush1.msra.mxu0 0.0
    %447 = vmatprep.subr.mxu0 0.0
    %448 = vmatpush1.msra.mxu0 0.0
    %449 = vmatprep.subr.mxu0 0.0
    %450 = vmatpush1.msra.mxu0 0.0
    %451 = vmatprep.subr.mxu0 0.0
    %452 = vmatpush1.msra.mxu0 0.0
    %453 = vmatprep.subr.mxu0 0.0
    %454 = vmatpush1.msra.mxu0 0.0
    %455 = vmatprep.subr.mxu0 0.0
    %456 = vmatpush1.msra.mxu0 0.0
    %457 = vmatprep.subr.mxu0 0.0
    %458 = vmatpush1.msra.mxu0 0.0
    %459 = vmatprep.subr.mxu0 0.0
    %460 = vmatpush1.msra.mxu0 0.0
    %461 = vmatprep.subr.mxu0 0.0
    %462 = vmatpush1.msra.mxu0 0.0
    %463 = vmatprep.subr.mxu0 0.0
    %464 = vmatpush1.msra.mxu0 0.0
    %465 = vmatprep.subr.mxu0 0.0
    %466 = vmatpush1.msra.mxu0 0.0
    %467 = vmatprep.subr.mxu0 0.0
    %468 = vmatpush1.msra.mxu0 0.0
    %469 = vmatprep.subr.mxu0 0.0
    %470 = vmatpush1.msra.mxu0 0.0
    %471 = vmatprep.subr.mxu0 0.0
    %472 = vmatpush1.msra.mxu0 0.0
    %473 = vmatprep.subr.mxu0 0.0
    %474 = vmatpush1.msra.mxu0 0.0
    %475 = vmatprep.mubr.f32.mxu0 0.0
    %476 = vmatmul.mubr.f32.gmra.mrb[0].mxu0 %v409
    %v477 = vpop.f32.mrb[0].mxu0
    %v478 = vadd.f32 0.0, %v477
    %v479 = vpop.f32.mrb[0].mxu0
    %480 = vdwg.mxu0
    %v481 = vadd.f32 %v82, %v478
    %v482 = vxor.u32 %v481, 2147483648
    %v483 = vmul.f32 %v482, 1.442695
    %v484 = vpow.pop %v483
    %v485 = vadd.f32 %v484, 1.0
    %v486 = vrcp.pop %v485
    %v487 = vmul.f32 1.0, %v486
    %v488 = vtanh.pop %v481
    %v489 = vmul.f32 %v487, %v399
    %491 = vrot.lane.b32.xlu0 %v488, 64
    %v492 = vpop.permute.xlu0 %491
    %v494 = vmul.f32 %v487, %v492
    %496 = vrot.lane.b32.xlu0 %v494, 32
    %v497 = vpop.permute.xlu0 %496
    %v499 = vadd.f32 %v489, %v497
    %v500 = vtanh.pop %v499
    %502 = vrot.lane.b32.xlu0 %v500, 64
    %v503 = vpop.permute.xlu0 %502
    %v505 = vmul.f32 %v487, %v503
    %507 = vrot.lane.b32.xlu0 %v505, 32
    %v508 = vpop.permute.xlu0 %507
    %v509 = vsel %vm107, %v508, 0
    %511 = vmatprep.subr.mxu0 0.0
    %512 = vmatpush1.msra.mxu0 %v39
    %513 = vmatprep.subr.mxu0 0.0
    %514 = vmatpush1.msra.mxu0 %v40
    %515 = vmatprep.subr.mxu0 0.0
    %516 = vmatpush1.msra.mxu0 %v41
    %517 = vmatprep.subr.mxu0 0.0
    %518 = vmatpush1.msra.mxu0 %v42
    %519 = vmatprep.subr.mxu0 0.0
    %520 = vmatpush1.msra.mxu0 0.0
    %521 = vmatprep.subr.mxu0 0.0
    %522 = vmatpush1.msra.mxu0 0.0
    %523 = vmatprep.subr.mxu0 0.0
    %524 = vmatpush1.msra.mxu0 0.0
    %525 = vmatprep.subr.mxu0 0.0
    %526 = vmatpush1.msra.mxu0 0.0
    %527 = vmatprep.subr.mxu0 0.0
    %528 = vmatpush1.msra.mxu0 0.0
    %529 = vmatprep.subr.mxu0 0.0
    %530 = vmatpush1.msra.mxu0 0.0
    %531 = vmatprep.subr.mxu0 0.0
    %532 = vmatpush1.msra.mxu0 0.0
    %533 = vmatprep.subr.mxu0 0.0
    %534 = vmatpush1.msra.mxu0 0.0
    %535 = vmatprep.subr.mxu0 0.0
    %536 = vmatpush1.msra.mxu0 0.0
    %537 = vmatprep.subr.mxu0 0.0
    %538 = vmatpush1.msra.mxu0 0.0
    %539 = vmatprep.subr.mxu0 0.0
    %540 = vmatpush1.msra.mxu0 0.0
    %541 = vmatprep.subr.mxu0 0.0
    %542 = vmatpush1.msra.mxu0 0.0
    %543 = vmatprep.subr.mxu0 0.0
    %544 = vmatpush1.msra.mxu0 0.0
    %545 = vmatprep.subr.mxu0 0.0
    %546 = vmatpush1.msra.mxu0 0.0
    %547 = vmatprep.subr.mxu0 0.0
    %548 = vmatpush1.msra.mxu0 0.0
    %549 = vmatprep.subr.mxu0 0.0
    %550 = vmatpush1.msra.mxu0 0.0
    %551 = vmatprep.subr.mxu0 0.0
    %552 = vmatpush1.msra.mxu0 0.0
    %553 = vmatprep.subr.mxu0 0.0
    %554 = vmatpush1.msra.mxu0 0.0
    %555 = vmatprep.subr.mxu0 0.0
    %556 = vmatpush1.msra.mxu0 0.0
    %557 = vmatprep.subr.mxu0 0.0
    %558 = vmatpush1.msra.mxu0 0.0
    %559 = vmatprep.subr.mxu0 0.0
    %560 = vmatpush1.msra.mxu0 0.0
    %561 = vmatprep.subr.mxu0 0.0
    %562 = vmatpush1.msra.mxu0 0.0
    %563 = vmatprep.subr.mxu0 0.0
    %564 = vmatpush1.msra.mxu0 0.0
    %565 = vmatprep.subr.mxu0 0.0
    %566 = vmatpush1.msra.mxu0 0.0
    %567 = vmatprep.subr.mxu0 0.0
    %568 = vmatpush1.msra.mxu0 0.0
    %569 = vmatprep.subr.mxu0 0.0
    %570 = vmatpush1.msra.mxu0 0.0
    %571 = vmatprep.subr.mxu0 0.0
    %572 = vmatpush1.msra.mxu0 0.0
    %573 = vmatprep.subr.mxu0 0.0
    %574 = vmatpush1.msra.mxu0 0.0
    %575 = vmatprep.mubr.f32.mxu0 0.0
    %576 = vmatmul.mubr.f32.gmra.mrb[0].mxu0 %v509
    %v577 = vpop.f32.mrb[0].mxu0
    %v578 = vadd.f32 0.0, %v577
    %v579 = vpop.f32.mrb[0].mxu0
    %580 = vdwg.mxu0
    %v581 = vadd.f32 %v88, %v578
    %v582 = vxor.u32 %v581, 2147483648
    %v583 = vmul.f32 %v582, 1.442695
    %v584 = vpow.pop %v583
    %v585 = vadd.f32 %v584, 1.0
    %v586 = vrcp.pop %v585
    %v587 = vmul.f32 1.0, %v586
    %v588 = vtanh.pop %v581
    %v589 = vmul.f32 %v587, %v499
    %591 = vrot.lane.b32.xlu0 %v588, 64
    %v592 = vpop.permute.xlu0 %591
    %v594 = vmul.f32 %v587, %v592
    %596 = vrot.lane.b32.xlu0 %v594, 32
    %v597 = vpop.permute.xlu0 %596
    %v599 = vadd.f32 %v589, %v597
    %v600 = vtanh.pop %v599
    %602 = vrot.lane.b32.xlu0 %v600, 64
    %v603 = vpop.permute.xlu0 %602
    %v605 = vmul.f32 %v587, %v603
    %607 = vrot.lane.b32.xlu0 %v605, 32
    %v608 = vpop.permute.xlu0 %607
    %v609 = vsel %vm107, %v608, 0
    %611 = vmatprep.subr.mxu0 0.0
    %612 = vmatpush1.msra.mxu0 %v39
    %613 = vmatprep.subr.mxu0 0.0
    %614 = vmatpush1.msra.mxu0 %v40
    %615 = vmatprep.subr.mxu0 0.0
    %616 = vmatpush1.msra.mxu0 %v41
    %617 = vmatprep.subr.mxu0 0.0
    %618 = vmatpush1.msra.mxu0 %v42
    %619 = vmatprep.subr.mxu0 0.0
    %620 = vmatpush1.msra.mxu0 0.0
    %621 = vmatprep.subr.mxu0 0.0
    %622 = vmatpush1.msra.mxu0 0.0
    %623 = vmatprep.subr.mxu0 0.0
    %624 = vmatpush1.msra.mxu0 0.0
    %625 = vmatprep.subr.mxu0 0.0
    %626 = vmatpush1.msra.mxu0 0.0
    %627 = vmatprep.subr.mxu0 0.0
    %628 = vmatpush1.msra.mxu0 0.0
    %629 = vmatprep.subr.mxu0 0.0
    %630 = vmatpush1.msra.mxu0 0.0
    %631 = vmatprep.subr.mxu0 0.0
    %632 = vmatpush1.msra.mxu0 0.0
    %633 = vmatprep.subr.mxu0 0.0
    %634 = vmatpush1.msra.mxu0 0.0
    %635 = vmatprep.subr.mxu0 0.0
    %636 = vmatpush1.msra.mxu0 0.0
    %637 = vmatprep.subr.mxu0 0.0
    %638 = vmatpush1.msra.mxu0 0.0
    %639 = vmatprep.subr.mxu0 0.0
    %640 = vmatpush1.msra.mxu0 0.0
    %641 = vmatprep.subr.mxu0 0.0
    %642 = vmatpush1.msra.mxu0 0.0
    %643 = vmatprep.subr.mxu0 0.0
    %644 = vmatpush1.msra.mxu0 0.0
    %645 = vmatprep.subr.mxu0 0.0
    %646 = vmatpush1.msra.mxu0 0.0
    %647 = vmatprep.subr.mxu0 0.0
    %648 = vmatpush1.msra.mxu0 0.0
    %649 = vmatprep.subr.mxu0 0.0
    %650 = vmatpush1.msra.mxu0 0.0
    %651 = vmatprep.subr.mxu0 0.0
    %652 = vmatpush1.msra.mxu0 0.0
    %653 = vmatprep.subr.mxu0 0.0
    %654 = vmatpush1.msra.mxu0 0.0
    %655 = vmatprep.subr.mxu0 0.0
    %656 = vmatpush1.msra.mxu0 0.0
    %657 = vmatprep.subr.mxu0 0.0
    %658 = vmatpush1.msra.mxu0 0.0
    %659 = vmatprep.subr.mxu0 0.0
    %660 = vmatpush1.msra.mxu0 0.0
    %661 = vmatprep.subr.mxu0 0.0
    %662 = vmatpush1.msra.mxu0 0.0
    %663 = vmatprep.subr.mxu0 0.0
    %664 = vmatpush1.msra.mxu0 0.0
    %665 = vmatprep.subr.mxu0 0.0
    %666 = vmatpush1.msra.mxu0 0.0
    %667 = vmatprep.subr.mxu0 0.0
    %668 = vmatpush1.msra.mxu0 0.0
    %669 = vmatprep.subr.mxu0 0.0
    %670 = vmatpush1.msra.mxu0 0.0
    %671 = vmatprep.subr.mxu0 0.0
    %672 = vmatpush1.msra.mxu0 0.0
    %673 = vmatprep.subr.mxu0 0.0
    %674 = vmatpush1.msra.mxu0 0.0
    %675 = vmatprep.mubr.f32.mxu0 0.0
    %676 = vmatmul.mubr.f32.gmra.mrb[0].mxu0 %v609
    %v677 = vpop.f32.mrb[0].mxu0
    %v678 = vadd.f32 0.0, %v677
    %v679 = vpop.f32.mrb[0].mxu0
    %680 = vdwg.mxu0
    %v681 = vadd.f32 %v94, %v678
    %v682 = vxor.u32 %v681, 2147483648
    %v683 = vmul.f32 %v682, 1.442695
    %v684 = vpow.pop %v683
    %v685 = vadd.f32 %v684, 1.0
    %v686 = vrcp.pop %v685
    %v687 = vmul.f32 1.0, %v686
    %v688 = vtanh.pop %v681
    %v689 = vmul.f32 %v687, %v599
    %691 = vrot.lane.b32.xlu0 %v688, 64
    %v692 = vpop.permute.xlu0 %691
    %v694 = vmul.f32 %v687, %v692
    %696 = vrot.lane.b32.xlu0 %v694, 32
    %v697 = vpop.permute.xlu0 %696
    %v699 = vadd.f32 %v689, %v697
    %v700 = vtanh.pop %v699
    %702 = vrot.lane.b32.xlu0 %v700, 64
    %v703 = vpop.permute.xlu0 %702
    %v705 = vmul.f32 %v687, %v703
    %707 = vrot.lane.b32.xlu0 %v705, 32
    %v708 = vpop.permute.xlu0 %707
    %v709 = vsel %vm107, %v708, 0
    %711 = vmatprep.subr.mxu0 0.0
    %712 = vmatpush1.msra.mxu0 %v39
    %713 = vmatprep.subr.mxu0 0.0
    %714 = vmatpush1.msra.mxu0 %v40
    %715 = vmatprep.subr.mxu0 0.0
    %716 = vmatpush1.msra.mxu0 %v41
    %717 = vmatprep.subr.mxu0 0.0
    %718 = vmatpush1.msra.mxu0 %v42
    %719 = vmatprep.subr.mxu0 0.0
    %720 = vmatpush1.msra.mxu0 0.0
    %721 = vmatprep.subr.mxu0 0.0
    %722 = vmatpush1.msra.mxu0 0.0
    %723 = vmatprep.subr.mxu0 0.0
    %724 = vmatpush1.msra.mxu0 0.0
    %725 = vmatprep.subr.mxu0 0.0
    %726 = vmatpush1.msra.mxu0 0.0
    %727 = vmatprep.subr.mxu0 0.0
    %728 = vmatpush1.msra.mxu0 0.0
    %729 = vmatprep.subr.mxu0 0.0
    %730 = vmatpush1.msra.mxu0 0.0
    %731 = vmatprep.subr.mxu0 0.0
    %732 = vmatpush1.msra.mxu0 0.0
    %733 = vmatprep.subr.mxu0 0.0
    %734 = vmatpush1.msra.mxu0 0.0
    %735 = vmatprep.subr.mxu0 0.0
    %736 = vmatpush1.msra.mxu0 0.0
    %737 = vmatprep.subr.mxu0 0.0
    %738 = vmatpush1.msra.mxu0 0.0
    %739 = vmatprep.subr.mxu0 0.0
    %740 = vmatpush1.msra.mxu0 0.0
    %741 = vmatprep.subr.mxu0 0.0
    %742 = vmatpush1.msra.mxu0 0.0
    %743 = vmatprep.subr.mxu0 0.0
    %744 = vmatpush1.msra.mxu0 0.0
    %745 = vmatprep.subr.mxu0 0.0
    %746 = vmatpush1.msra.mxu0 0.0
    %747 = vmatprep.subr.mxu0 0.0
    %748 = vmatpush1.msra.mxu0 0.0
    %749 = vmatprep.subr.mxu0 0.0
    %750 = vmatpush1.msra.mxu0 0.0
    %751 = vmatprep.subr.mxu0 0.0
    %752 = vmatpush1.msra.mxu0 0.0
    %753 = vmatprep.subr.mxu0 0.0
    %754 = vmatpush1.msra.mxu0 0.0
    %755 = vmatprep.subr.mxu0 0.0
    %756 = vmatpush1.msra.mxu0 0.0
    %757 = vmatprep.subr.mxu0 0.0
    %758 = vmatpush1.msra.mxu0 0.0
    %759 = vmatprep.subr.mxu0 0.0
    %760 = vmatpush1.msra.mxu0 0.0
    %761 = vmatprep.subr.mxu0 0.0
    %762 = vmatpush1.msra.mxu0 0.0
    %763 = vmatprep.subr.mxu0 0.0
    %764 = vmatpush1.msra.mxu0 0.0
    %765 = vmatprep.subr.mxu0 0.0
    %766 = vmatpush1.msra.mxu0 0.0
    %767 = vmatprep.subr.mxu0 0.0
    %768 = vmatpush1.msra.mxu0 0.0
    %769 = vmatprep.subr.mxu0 0.0
    %770 = vmatpush1.msra.mxu0 0.0
    %771 = vmatprep.subr.mxu0 0.0
    %772 = vmatpush1.msra.mxu0 0.0
    %773 = vmatprep.subr.mxu0 0.0
    %774 = vmatpush1.msra.mxu0 0.0
    %775 = vmatprep.mubr.f32.mxu0 0.0
    %776 = vmatmul.mubr.f32.gmra.mrb[0].mxu0 %v709
    %v777 = vpop.f32.mrb[0].mxu0
    %v778 = vadd.f32 0.0, %v777
    %v779 = vpop.f32.mrb[0].mxu0
    %780 = vdwg.mxu0
    %v781 = vadd.f32 %v100, %v778
    %v782 = vxor.u32 %v781, 2147483648
    %v783 = vmul.f32 %v782, 1.442695
    %v784 = vpow.pop %v783
    %v785 = vadd.f32 %v784, 1.0
    %v786 = vrcp.pop %v785
    %v787 = vmul.f32 1.0, %v786
    %v788 = vtanh.pop %v781
    %v789 = vmul.f32 %v787, %v699
    %791 = vrot.lane.b32.xlu0 %v788, 64
    %v792 = vpop.permute.xlu0 %791
    %v794 = vmul.f32 %v787, %v792
    %796 = vrot.lane.b32.xlu0 %v794, 32
    %v797 = vpop.permute.xlu0 %796
    %v799 = vadd.f32 %v789, %v797
    %v800 = vtanh.pop %v799
    %802 = vrot.lane.b32.xlu0 %v800, 64
    %v803 = vpop.permute.xlu0 %802
    %v805 = vmul.f32 %v787, %v803
    %807 = vrot.lane.b32.xlu0 %v805, 32
    %v808 = vpop.permute.xlu0 %807
    %v809 = vsel %vm107, %v808, 0
    %811 = vmatprep.subr.mxu0 0.0
    %812 = vmatpush1.msra.mxu0 %v39
    %813 = vmatprep.subr.mxu0 0.0
    %814 = vmatpush1.msra.mxu0 %v40
    %815 = vmatprep.subr.mxu0 0.0
    %816 = vmatpush1.msra.mxu0 %v41
    %817 = vmatprep.subr.mxu0 0.0
    %818 = vmatpush1.msra.mxu0 %v42
    %819 = vmatprep.subr.mxu0 0.0
    %820 = vmatpush1.msra.mxu0 0.0
    %821 = vmatprep.subr.mxu0 0.0
    %822 = vmatpush1.msra.mxu0 0.0
    %823 = vmatprep.subr.mxu0 0.0
    %824 = vmatpush1.msra.mxu0 0.0
    %825 = vmatprep.subr.mxu0 0.0
    %826 = vmatpush1.msra.mxu0 0.0
    %827 = vmatprep.subr.mxu0 0.0
    %828 = vmatpush1.msra.mxu0 0.0
    %829 = vmatprep.subr.mxu0 0.0
    %830 = vmatpush1.msra.mxu0 0.0
    %831 = vmatprep.subr.mxu0 0.0
    %832 = vmatpush1.msra.mxu0 0.0
    %833 = vmatprep.subr.mxu0 0.0
    %834 = vmatpush1.msra.mxu0 0.0
    %835 = vmatprep.subr.mxu0 0.0
    %836 = vmatpush1.msra.mxu0 0.0
    %837 = vmatprep.subr.mxu0 0.0
    %838 = vmatpush1.msra.mxu0 0.0
    %839 = vmatprep.subr.mxu0 0.0
    %840 = vmatpush1.msra.mxu0 0.0
    %841 = vmatprep.subr.mxu0 0.0
    %842 = vmatpush1.msra.mxu0 0.0
    %843 = vmatprep.subr.mxu0 0.0
    %844 = vmatpush1.msra.mxu0 0.0
    %845 = vmatprep.subr.mxu0 0.0
    %846 = vmatpush1.msra.mxu0 0.0
    %847 = vmatprep.subr.mxu0 0.0
    %848 = vmatpush1.msra.mxu0 0.0
    %849 = vmatprep.subr.mxu0 0.0
    %850 = vmatpush1.msra.mxu0 0.0
    %851 = vmatprep.subr.mxu0 0.0
    %852 = vmatpush1.msra.mxu0 0.0
    %853 = vmatprep.subr.mxu0 0.0
    %854 = vmatpush1.msra.mxu0 0.0
    %855 = vmatprep.subr.mxu0 0.0
    %856 = vmatpush1.msra.mxu0 0.0
    %857 = vmatprep.subr.mxu0 0.0
    %858 = vmatpush1.msra.mxu0 0.0
    %859 = vmatprep.subr.mxu0 0.0
    %860 = vmatpush1.msra.mxu0 0.0
    %861 = vmatprep.subr.mxu0 0.0
    %862 = vmatpush1.msra.mxu0 0.0
    %863 = vmatprep.subr.mxu0 0.0
    %864 = vmatpush1.msra.mxu0 0.0
    %865 = vmatprep.subr.mxu0 0.0
    %866 = vmatpush1.msra.mxu0 0.0
    %867 = vmatprep.subr.mxu0 0.0
    %868 = vmatpush1.msra.mxu0 0.0
    %869 = vmatprep.subr.mxu0 0.0
    %870 = vmatpush1.msra.mxu0 0.0
    %871 = vmatprep.subr.mxu0 0.0
    %872 = vmatpush1.msra.mxu0 0.0
    %873 = vmatprep.subr.mxu0 0.0
    %874 = vmatpush1.msra.mxu0 0.0
    %875 = vmatprep.mubr.f32.mxu0 0.0
    %876 = vmatmul.mubr.f32.gmra.mrb[0].mxu0 %v809
    %v877 = vpop.f32.mrb[0].mxu0
    %v878 = vadd.f32 0.0, %v877
    %v879 = vpop.f32.mrb[0].mxu0
    %880 = vdwg.mxu0
    %v881 = vadd.f32 %v106, %v878
    %v882 = vxor.u32 %v881, 2147483648
    %v883 = vmul.f32 %v882, 1.442695
    %v884 = vpow.pop %v883
    %v885 = vadd.f32 %v884, 1.0
    %v886 = vrcp.pop %v885
    %v887 = vmul.f32 1.0, %v886
    %v888 = vtanh.pop %v881
    %v889 = vmul.f32 %v887, %v799
    %891 = vrot.lane.b32.xlu0 %v888, 64
    %v892 = vpop.permute.xlu0 %891
    %v894 = vmul.f32 %v887, %v892
    %896 = vrot.lane.b32.xlu0 %v894, 32
    %v897 = vpop.permute.xlu0 %896
    %v899 = vadd.f32 %v889, %v897
    %v900 = vtanh.pop %v899
    %902 = vrot.lane.b32.xlu0 %v900, 64
    %v903 = vpop.permute.xlu0 %902
    %v905 = vmul.f32 %v887, %v903
    %v906 = vld [vmem:[%s4] sm:$0x1]
    %v908 = vlaneseq
    %v909 = vshrl.u32 %v908, 7
    %v910 = vsub.s32 0, %v909
    %v911 = vrot.slane %v906, %v910
    %912 = vrot.lane.b32.xlu0 %v911, 96
    %v913 = vpop.permute.xlu0 %912
    %v915 = vmul.f32 %v905, %v913
    %917 = vrot.lane.b32.xlu0 %v915, 32
    %v918 = vpop.permute.xlu0 %917
    %v920 = vsel %vm107, %v918, 0.0
    %921 = vadd.xlane.f32.xlu0 %v920
    %v922 = vpop.xlane.xlu0 %921
    %v923 = vld [vmem:[#allocation2] sm:$0x1]
    %v925 = vlaneseq
    %v926 = vshrl.u32 %v925, 7
    %v927 = vsub.s32 0, %v926
    %v928 = vrot.slane %v923, %v927
    %v930 = vadd.f32 %v922, %v928
    %vm931 = vcmask 7168
    %932 = vst.msk [vmem:[%s6] sm:$0xff] %vm931, %v930
    // Predicated region
    $region30: #{simple_lstm_forward.1} parent=1 // pred_check
      _
    $region31: #{simple_lstm_forward.1} parent=1 // pred_check_branch
      %934 = sbr.rel (0) target = $region33
    $region32: #{simple_lstm_forward.1} parent=1 // pred_region
      _
    $region33: #{simple_lstm_forward.1} parent=1 // pred_fallthru
      _
    // Predicated region
    $region34: #{simple_lstm_forward.1} parent=1 // pred_check
      _
    $region35: #{simple_lstm_forward.1} parent=1 // pred_check_branch
      %936 = sbr.rel (0) target = $region37
    $region36: #{simple_lstm_forward.1} parent=1 // pred_region
      _
    $region37: #{simple_lstm_forward.1} parent=1 // pred_fallthru
      _
    %937 = vsyncpa [#allocation4], 1

</llo_original>
